<compile_context>
chip_gen: v7x
topology: tpu7x:2x2x1
jax: 0.10.0
libtpu: 0.0.40
codegen_flags: <defaults>
</compile_context>

<pallas_src>
import functools

import numpy as np
import jax
import jax.numpy as jnp
from jax import lax
from jax.experimental import pallas as pl
from jax.experimental.pallas import tpu as pltpu

DIST_X_THR = 0.01
BIG = 1.0e9          # > any possible squared distance for O(1) coordinates
PENALTY = 1.0e10     # pushes already-selected entries above BIG


def _pick_lane_tile(n):
    """Lane-axis tile size obeying the (.,128)-or-full BlockSpec rule."""
    if n <= 512:
        return n
    for t in (512, 256, 128):
        if n % t == 0:
            return t
    return n  # TODO(synk): ragged lane tiling for Nl not a multiple of 128


# ---------------------------------------------------------------------------
# Kernel 1: masked squared pairwise distance (transposed, lane-dense over Nl)
#           + min valid-neighbor count as a single (1,1) scalar.
# ---------------------------------------------------------------------------
def _dist_kernel(lower_t_ref, upper_ref, dist_ref, cnt_ref):
    i = pl.program_id(0)
    lower_t = lower_t_ref[...]                 # (3, TL)   lane-dense lower verts
    upper = upper_ref[...]                     # (Nu, 3)

    dx = lower_t[0:1, :] - upper[:, 0:1]       # (Nu, TL)
    x_ok = jnp.abs(dx) < DIST_X_THR            # boolean mask (kept boolean)
    d2 = dx * dx
    for c in range(1, 3):
        dc = lower_t[c:c + 1, :] - upper[:, c:c + 1]
        d2 = d2 + dc * dc

    # squared distance is enough for ordering; no sqrt (EUP pass removed)
    dist_ref[...] = jnp.where(x_ok, d2, BIG)

    counts = jnp.sum(x_ok.astype(jnp.float32), axis=0, keepdims=True)  # (1, TL)
    tile_min = jnp.min(counts, axis=1, keepdims=True)                  # (1, 1)

    @pl.when(i == 0)
    def _():
        cnt_ref[...] = tile_min

    @pl.when(i > 0)
    def _():
        cnt_ref[...] = jnp.minimum(cnt_ref[...], tile_min)


def masked_pairwise_dist(mesh_lower_t, mesh_upper):
    _, nl = mesh_lower_t.shape
    nu = mesh_upper.shape[0]
    tl = _pick_lane_tile(nl)
    return pl.pallas_call(
        _dist_kernel,
        grid=(nl // tl,),
        out_shape=(jax.ShapeDtypeStruct((nu, nl), jnp.float32),
                   jax.ShapeDtypeStruct((1, 1), jnp.float32)),
        in_specs=[pl.BlockSpec((3, tl), lambda i: (0, i)),
                  pl.BlockSpec((nu, 3), lambda i: (0, 0))],
        out_specs=(pl.BlockSpec((nu, tl), lambda i: (0, i)),
                   pl.BlockSpec((1, 1), lambda i: (0, 0))),
        compiler_params=pltpu.CompilerParams(
            # (1,1) count block is a min-accumulator across Nl tiles
            dimension_semantics=("arbitrary",)),
    )(mesh_lower_t, mesh_upper)


# ---------------------------------------------------------------------------
# Kernel 2 (fused): batch-invariant top-k selection (single reduce / iter,
# unrolled) + batch-folded MXU matmul for the neighbor mean + squared error.
# Output is lane-dense (B*3, Nl).
# ---------------------------------------------------------------------------
def _loss_kernel(dist_ref, rgb_up_ref, rgb_low_ref, out_ref, *, top_k):
    d0 = dist_ref[...]                         # (Nu, TL) masked squared dists
    w0 = jnp.zeros_like(d0)

    def body(_, carry):
        d, w = carry
        m = jnp.min(d, axis=0, keepdims=True)  # (1, TL): one XLU reduce / iter
        # exact float equality against the value produced by the same reduce;
        # assumes no exact bit-identical ties among the top-k candidates
        sel = (d == m).astype(jnp.float32)
        return d + sel * PENALTY, w + sel

    _, w = lax.fori_loop(0, top_k, body, (d0, w0), unroll=True)
    w = w * (1.0 / top_k)                      # normalized selection weights

    # (B*3, Nu) @ (Nu, TL): whole batch in one MXU matmul, lane-dense output
    mean_rgb = jnp.dot(rgb_up_ref[...], w, preferred_element_type=jnp.float32)
    diff = rgb_low_ref[...] - mean_rgb         # detach() only affects grads
    out_ref[...] = diff * diff


def _run_loss(dist_t, rgb_up_flat, rgb_low_flat, top_k):
    nu, nl = dist_t.shape
    bc = rgb_up_flat.shape[0]                  # B*3
    tl = _pick_lane_tile(nl)
    kern = functools.partial(_loss_kernel, top_k=top_k)
    return pl.pallas_call(
        kern,
        grid=(nl // tl,),
        out_shape=jax.ShapeDtypeStruct((bc, nl), jnp.float32),
        in_specs=[pl.BlockSpec((nu, tl), lambda i: (0, i)),
                  pl.BlockSpec((bc, nu), lambda i: (0, 0)),
                  pl.BlockSpec((bc, tl), lambda i: (0, i))],
        out_specs=pl.BlockSpec((bc, tl), lambda i: (0, i)),
        compiler_params=pltpu.CompilerParams(
            dimension_semantics=("parallel",)),   # Nl tiles independent (v7x 2-TC)
    )(dist_t, rgb_up_flat, rgb_low_flat)


def arm_rgb_reg(mesh_neutral_pose, is_upper_arm, is_lower_arm, rgb):
    """Forward pass of ArmRGBReg.  Returns loss of shape (B, Nl, 3)."""
    # --- host glue: boolean-mask gathers (concrete masks -> static shapes) ---
    up_idx = np.where(np.asarray(is_upper_arm))[0]
    low_idx = np.where(np.asarray(is_lower_arm))[0]
    nu, nl = len(up_idx), len(low_idx)
    B = rgb.shape[0]

    mesh_upper = jnp.take(mesh_neutral_pose, up_idx, axis=0)              # (Nu, 3)
    mesh_lower_t = jnp.transpose(jnp.take(mesh_neutral_pose, low_idx, axis=0))  # (3, Nl)

    # lane-dense rgb: (B, 3, N) flattened to (B*3, N) so vertices sit on lanes
    rgb_t = jnp.transpose(rgb, (0, 2, 1)).astype(jnp.float32)             # (B, 3, V)
    rgb_up_flat = jnp.take(rgb_t, up_idx, axis=2).reshape(B * 3, nu)      # (B*3, Nu)
    rgb_low_flat = jnp.take(rgb_t, low_idx, axis=2).reshape(B * 3, nl)    # (B*3, Nl)

    # kernel 1: masked squared distances + min valid count (single scalar)
    dist_t, cnt = masked_pairwise_dist(mesh_lower_t, mesh_upper)

    # host glue: data-dependent top_k must be a concrete Python int
    valid_num = int(cnt[0, 0])
    top_k = min(50, valid_num)
    assert top_k >= 1, "degenerate input: no valid upper-arm neighbors"

    loss_flat = _run_loss(dist_t, rgb_up_flat, rgb_low_flat, top_k)       # (B*3, Nl)
    return jnp.transpose(loss_flat.reshape(B, 3, nl), (0, 2, 1))          # (B, Nl, 3)


# ---------------------------------------------------------------------------
# Pure-numpy reference (mirrors the PyTorch forward) for verification.
# ---------------------------------------------------------------------------
def arm_rgb_reg_reference(mesh, is_up, is_low, rgb):
    mesh = np.asarray(mesh)
    rgb = np.asarray(rgb)
    up_idx = np.where(np.asarray(is_up))[0]
    low_idx = np.where(np.asarray(is_low))[0]
    mu = mesh[up_idx]
    ml = mesh[low_idx]
    dist_x = np.abs(ml[:, None, 0] - mu[None, :, 0])
    mask = (dist_x < DIST_X_THR).astype(np.float32)
    valid_num = int(mask.sum(1).min())
    dist = np.sqrt(((ml[:, None, :] - mu[None, :, :]) ** 2).sum(2))
    dist = dist * mask + 9999 * (1 - mask)
    top_k = min(50, valid_num)
    idxs = np.argsort(dist, axis=1)[:, :top_k]                   # k smallest
    upper_arm_idx = up_idx[idxs].reshape(-1)
    B = rgb.shape[0]
    mean_rgb = rgb[:, upper_arm_idx, :].reshape(B, len(low_idx), top_k, 3).mean(2)
    return (rgb[:, low_idx, :] - mean_rgb) ** 2


if __name__ == "__main__":
    key = jax.random.PRNGKey(0)
    k1, k2 = jax.random.split(key)

    V = 64          # "vertex_num_upsampled" (small synthetic stand-in)
    B = 2
    NU = 24         # upper-arm vertices
    NL = 16         # lower-arm vertices

    # mesh: x-coord confined to a 0.02 range so the 0.01 x-threshold keeps
    # a healthy number of valid neighbors per lower-arm vertex.
    mesh_neutral_pose = jax.random.uniform(k1, (V, 3), jnp.float32)
    mesh_neutral_pose = mesh_neutral_pose * jnp.array([0.02, 1.0, 1.0],
                                                      jnp.float32)
    rgb = jax.random.uniform(k2, (B, V, 3), jnp.float32)

    is_upper_arm = np.zeros((V,), dtype=bool)
    is_upper_arm[:NU] = True
    is_lower_arm = np.zeros((V,), dtype=bool)
    is_lower_arm[NU:NU + NL] = True

    loss = arm_rgb_reg(mesh_neutral_pose, is_upper_arm, is_lower_arm, rgb)
    loss = jax.block_until_ready(loss)

    ref = arm_rgb_reg_reference(mesh_neutral_pose, is_upper_arm,
                                is_lower_arm, rgb)
    assert loss.shape == ref.shape, (loss.shape, ref.shape)
    np.testing.assert_allclose(np.asarray(loss), ref, rtol=1e-5, atol=1e-5)

    print("KERNEL_OK")
</pallas_src>

<mosaic_0001>
module attributes {stable_mosaic.version = 11 : i64} {
  func.func @_dist_kernel(%arg0: i32, %arg1: memref<3x16xf32, #tpu.memory_space<vmem>>, %arg2: memref<24x3xf32, #tpu.memory_space<vmem>>, %arg3: memref<24x16xf32, #tpu.memory_space<vmem>>, %arg4: memref<1x1xf32, #tpu.memory_space<vmem>>) attributes {dimension_semantics = [#tpu.dimension_semantics<arbitrary>], iteration_bounds = array<i64: 1>, scalar_prefetch = 0 : i64, scratch_operands = 0 : i64, tpu.core_type = #tpu.core_type<tc>, window_params = [{transform_indices = @transform_0, window_bounds = array<i64: 3, 16>}, {pipeline_mode = #tpu.pipeline_mode<synchronous>, transform_indices = @transform_1, window_bounds = array<i64: 24, 3>}, {transform_indices = @transform_2, window_bounds = array<i64: 24, 16>}, {pipeline_mode = #tpu.pipeline_mode<synchronous>, transform_indices = @transform_3, window_bounds = array<i64: 1, 1>}]} {
    %c0 = arith.constant 0 : index
    %c0_0 = arith.constant 0 : index
    %0 = vector.load %arg1[%c0, %c0_0] : memref<3x16xf32, #tpu.memory_space<vmem>>, vector<3x16xf32>
    %c0_1 = arith.constant 0 : index
    %c0_2 = arith.constant 0 : index
    %1 = vector.load %arg2[%c0_1, %c0_2] : memref<24x3xf32, #tpu.memory_space<vmem>>, vector<24x3xf32>
    %2 = vector.extract_strided_slice %0 {offsets = [0, 0], sizes = [1, 16], strides = [1, 1]} : vector<3x16xf32> to vector<1x16xf32>
    %3 = vector.extract_strided_slice %1 {offsets = [0, 0], sizes = [24, 1], strides = [1, 1]} : vector<24x3xf32> to vector<24x1xf32>
    %4 = vector.broadcast %2 : vector<1x16xf32> to vector<24x16xf32>
    %5 = vector.broadcast %3 : vector<24x1xf32> to vector<24x16xf32>
    %6 = arith.subf %4, %5 : vector<24x16xf32>
    %7 = math.absf %6 : vector<24x16xf32>
    %cst = arith.constant 0.00999999977 : f32
    %8 = vector.broadcast %cst : f32 to vector<24x16xf32>
    %9 = arith.cmpf olt, %7, %8 : vector<24x16xf32>
    %10 = arith.mulf %6, %6 : vector<24x16xf32>
    %11 = vector.extract_strided_slice %0 {offsets = [1, 0], sizes = [1, 16], strides = [1, 1]} : vector<3x16xf32> to vector<1x16xf32>
    %12 = vector.extract_strided_slice %1 {offsets = [0, 1], sizes = [24, 1], strides = [1, 1]} : vector<24x3xf32> to vector<24x1xf32>
    %13 = vector.broadcast %11 : vector<1x16xf32> to vector<24x16xf32>
    %14 = vector.broadcast %12 : vector<24x1xf32> to vector<24x16xf32>
    %15 = arith.subf %13, %14 : vector<24x16xf32>
    %16 = arith.mulf %15, %15 : vector<24x16xf32>
    %17 = arith.addf %10, %16 : vector<24x16xf32>
    %18 = vector.extract_strided_slice %0 {offsets = [2, 0], sizes = [1, 16], strides = [1, 1]} : vector<3x16xf32> to vector<1x16xf32>
    %19 = vector.extract_strided_slice %1 {offsets = [0, 2], sizes = [24, 1], strides = [1, 1]} : vector<24x3xf32> to vector<24x1xf32>
    %20 = vector.broadcast %18 : vector<1x16xf32> to vector<24x16xf32>
    %21 = vector.broadcast %19 : vector<24x1xf32> to vector<24x16xf32>
    %22 = arith.subf %20, %21 : vector<24x16xf32>
    %23 = arith.mulf %22, %22 : vector<24x16xf32>
    %24 = arith.addf %17, %23 : vector<24x16xf32>
    %cst_3 = arith.constant 1.000000e+09 : f32
    %25 = vector.broadcast %cst_3 : f32 to vector<24x16xf32>
    %26 = arith.select %9, %24, %25 : vector<24x16xi1>, vector<24x16xf32>
    %c0_4 = arith.constant 0 : index
    %c0_5 = arith.constant 0 : index
    %27 = vector.load %arg3[%c0_4, %c0_5] : memref<24x16xf32, #tpu.memory_space<vmem>>, vector<24x16xf32>
    tpu.vector_store %arg3[%c0_4, %c0_5], %26 {strides = array<i32>} : memref<24x16xf32, #tpu.memory_space<vmem>>, vector<24x16xf32>,
    %28 = arith.extui %9 : vector<24x16xi1> to vector<24x16xi32>
    %29 = arith.sitofp %28 : vector<24x16xi32> to vector<24x16xf32>
    %cst_6 = arith.constant dense<0.000000e+00> : vector<16xf32>
    %30 = vector.multi_reduction <add>, %29, %cst_6 [0] : vector<24x16xf32> to vector<16xf32>
    %31 = vector.shape_cast %30 : vector<16xf32> to vector<1x16xf32>
    %cst_7 = arith.constant dense<0x7F800000> : vector<1xf32>
    %32 = vector.multi_reduction <minimumf>, %31, %cst_7 [1] : vector<1x16xf32> to vector<1xf32>
    %33 = vector.shape_cast %32 : vector<1xf32> to vector<1x1xf32>
    %c0_i32 = arith.constant 0 : i32
    %34 = arith.cmpi eq, %arg0, %c0_i32 : i32
    %35 = arith.extui %34 : i1 to i32
    %c0_i32_8 = arith.constant 0 : i32
    %36 = arith.cmpi ne, %35, %c0_i32_8 : i32
    scf.if %36 {
      %c0_11 = arith.constant 0 : index
      %c0_12 = arith.constant 0 : index
      %40 = vector.load %arg4[%c0_11, %c0_12] : memref<1x1xf32, #tpu.memory_space<vmem>>, vector<1x1xf32>
      tpu.vector_store %arg4[%c0_11, %c0_12], %33 {strides = array<i32>} : memref<1x1xf32, #tpu.memory_space<vmem>>, vector<1x1xf32>,
    } else {
    }
    %c0_i32_9 = arith.constant 0 : i32
    %37 = arith.cmpi sgt, %arg0, %c0_i32_9 : i32
    %38 = arith.extui %37 : i1 to i32
    %c0_i32_10 = arith.constant 0 : i32
    %39 = arith.cmpi ne, %38, %c0_i32_10 : i32
    scf.if %39 {
      %c0_11 = arith.constant 0 : index
      %c0_12 = arith.constant 0 : index
      %40 = vector.load %arg4[%c0_11, %c0_12] : memref<1x1xf32, #tpu.memory_space<vmem>>, vector<1x1xf32>
      %41 = arith.minimumf %40, %33 : vector<1x1xf32>
      %c0_13 = arith.constant 0 : index
      %c0_14 = arith.constant 0 : index
      %42 = vector.load %arg4[%c0_13, %c0_14] : memref<1x1xf32, #tpu.memory_space<vmem>>, vector<1x1xf32>
      tpu.vector_store %arg4[%c0_13, %c0_14], %41 {strides = array<i32>} : memref<1x1xf32, #tpu.memory_space<vmem>>, vector<1x1xf32>,
    } else {
    }
    return
  }
  func.func @transform_0(%arg0: i32) -> (i32, i32) {
    %c0_i32 = arith.constant 0 : i32
    %c0_i32_0 = arith.constant 0 : i32
    return %c0_i32, %arg0 : i32, i32
  }
  func.func @transform_1(%arg0: i32) -> (i32, i32) {
    %c0_i32 = arith.constant 0 : i32
    %c0_i32_0 = arith.constant 0 : i32
    %c0_i32_1 = arith.constant 0 : i32
    return %c0_i32, %c0_i32_0 : i32, i32
  }
  func.func @transform_2(%arg0: i32) -> (i32, i32) {
    %c0_i32 = arith.constant 0 : i32
    %c0_i32_0 = arith.constant 0 : i32
    return %c0_i32, %arg0 : i32, i32
  }
  func.func @transform_3(%arg0: i32) -> (i32, i32) {
    %c0_i32 = arith.constant 0 : i32
    %c0_i32_0 = arith.constant 0 : i32
    %c0_i32_1 = arith.constant 0 : i32
    return %c0_i32, %c0_i32_0 : i32, i32
  }
}

</mosaic_0001>

<llo_original>
// kernel: tpu_custom_call.1
$region0: #{tpu_custom_call.1}
  #allocation0 [shape = 'u32[]', space=smem, size = 0x4, offset = 0x4, fixed_abs, tag = 'smem constant byte address 0x4 - core index']
  #allocation1 [shape = 'u32[144,128]{1,0:T(1,128)}', space=vmem, size = 0x12000, scoped, tag = 'internal scratch']
  %s0 = inlined_call_operand.vmem [shape: f32[3,16], index: 0, kind: input, shape index: {}]
  %s1 = inlined_call_operand.vmem [shape: f32[24,3], index: 1, kind: input, shape index: {}]
  %s2 = inlined_call_operand.vmem [shape: f32[24,16], index: 2, kind: output, shape index: {0}]
  %s3 = inlined_call_operand.hbm [shape: f32[1,1], index: 3, kind: output, shape index: {1}]
  %4 = xla_tuple %s2, %s3
  %s5 = sld [smem:[#allocation0]]
  $region34: #{tpu_custom_call.1} parent=0
    _
  %s7 = ssub.s32 1, %s5
  %s8 = scalar_select 0, %s7, %s5
  $region1: #{tpu_custom_call.1} parent=0
    #allocation2 [shape = 'u8[512]{0}', space=vmem, size = 0x400, scoped, tag = 'output window, operand 1, single buffered']
    #allocation3 [shape = 's32[1]{0}', space=sflag, size = 0x4, scoped, tag = 'scoped memory for tpu_custom_call.1']
    %9 = vsyncpa [#allocation3], 0
    // Predicated region
    $region2: #{tpu_custom_call.1} parent=1 // pred_check
      _
    $region3: #{tpu_custom_call.1} parent=1 // pred_check_branch
      %11 = sbr.rel (0) target = $region5
    $region4: #{tpu_custom_call.1} parent=1 // pred_region
      _
    $region5: #{tpu_custom_call.1} parent=1 // pred_fallthru
      _
    // Predicated region
    $region6: #{tpu_custom_call.1} parent=1 // pred_check
      _
    $region7: #{tpu_custom_call.1} parent=1 // pred_check_branch
      %13 = sbr.rel (0) target = $region9
    $region8: #{tpu_custom_call.1} parent=1 // pred_region
      _
    $region9: #{tpu_custom_call.1} parent=1 // pred_fallthru
      _
    %v14 = vld [vmem:[%s0] sm:$0x7]
    %v15 = vld [vmem:[%s1] sm:$0xff]
    %v16 = vld [vmem:[%s1 + $0x8] sm:$0xff]
    %v17 = vld [vmem:[%s1 + $0x10] sm:$0xff]
    %v18 = vlaneseq
    %v19 = vshrl.u32 %v18, 7
    %v20 = vsub.s32 0, %v19
    %v21 = vrot.slane %v14, %v20
    %23 = vset.pattern.permute.xlu0 0
    %24 = vperm.xlu0 %23, %v15
    %v25 = vpop.permute.xlu0 %24
    %28 = vset.pattern.permute.xlu0 0
    %29 = vperm.xlu0 %28, %v16
    %v30 = vpop.permute.xlu0 %29
    %33 = vset.pattern.permute.xlu0 0
    %34 = vperm.xlu0 %33, %v17
    %v35 = vpop.permute.xlu0 %34
    %v37 = vsub.f32 %v21, %v25
    %v38 = vsub.f32 %v21, %v30
    %v39 = vsub.f32 %v21, %v35
    %v40 = vand.u32 2147483647, %v37
    %v41 = vand.u32 2147483647, %v38
    %v42 = vand.u32 2147483647, %v39
    %vm43 = vcmp.lt.f32.partialorder %v40, 0.01
    %vm44 = vcmp.lt.f32.partialorder %v41, 0.01
    %vm45 = vcmp.lt.f32.partialorder %v42, 0.01
    %v46 = vmul.f32 %v37, %v37
    %v47 = vmul.f32 %v38, %v38
    %v48 = vmul.f32 %v39, %v39
    %v49 = vlaneseq
    %v50 = vshrl.u32 %v49, 7
    %v51 = vsub.s32 1, %v50
    %v52 = vrot.slane %v14, %v51
    %53 = vset.pattern.permute.xlu0 1
    %54 = vperm.xlu0 %53, %v15
    %v55 = vpop.permute.xlu0 %54
    %57 = vset.pattern.permute.xlu0 1
    %58 = vperm.xlu0 %57, %v16
    %v59 = vpop.permute.xlu0 %58
    %61 = vset.pattern.permute.xlu0 1
    %62 = vperm.xlu0 %61, %v17
    %v63 = vpop.permute.xlu0 %62
    %v65 = vsub.f32 %v52, %v55
    %v66 = vsub.f32 %v52, %v59
    %v67 = vsub.f32 %v52, %v63
    %v68 = vmul.f32 %v65, %v65
    %v69 = vmul.f32 %v66, %v66
    %v70 = vmul.f32 %v67, %v67
    %v71 = vadd.f32 %v46, %v68
    %v72 = vadd.f32 %v47, %v69
    %v73 = vadd.f32 %v48, %v70
    %v74 = vlaneseq
    %v75 = vshrl.u32 %v74, 7
    %v76 = vsub.s32 2, %v75
    %v77 = vrot.slane %v14, %v76
    %78 = vset.pattern.permute.xlu0 2
    %79 = vperm.xlu0 %78, %v15
    %v80 = vpop.permute.xlu0 %79
    %82 = vset.pattern.permute.xlu0 2
    %83 = vperm.xlu0 %82, %v16
    %v84 = vpop.permute.xlu0 %83
    %86 = vset.pattern.permute.xlu0 2
    %87 = vperm.xlu0 %86, %v17
    %v88 = vpop.permute.xlu0 %87
    %v90 = vsub.f32 %v77, %v80
    %v91 = vsub.f32 %v77, %v84
    %v92 = vsub.f32 %v77, %v88
    %v93 = vmul.f32 %v90, %v90
    %v94 = vmul.f32 %v91, %v91
    %v95 = vmul.f32 %v92, %v92
    %v96 = vadd.f32 %v71, %v93
    %v97 = vadd.f32 %v72, %v94
    %v98 = vadd.f32 %v73, %v95
    %v99 = vsel %vm43, %v96, 1e+09
    %v100 = vsel %vm44, %v97, 1e+09
    %v101 = vsel %vm45, %v98, 1e+09
    %vm102 = vcmask 130048
    %103 = vst.msk [vmem:[%s2] sm:$0xff] %vm102, %v99
    %104 = vst.msk [vmem:[%s2 + $0x8] sm:$0xff] %vm102, %v100
    %105 = vst.msk [vmem:[%s2 + $0x10] sm:$0xff] %vm102, %v101
    %v106 = vsel %vm43, 1, 0
    %v107 = vsel %vm44, 1, 0
    %v108 = vsel %vm45, 1, 0
    %v109 = vcvt.s32.f32 %v106
    %v110 = vcvt.s32.f32 %v107
    %v111 = vcvt.s32.f32 %v108
    %v112 = vsel %vm102, %v109, 0.0
    %v113 = vsel %vm102, %v110, 0.0
    %v114 = vadd.f32 %v112, %v113
    %v115 = vsel %vm102, %v111, 0.0
    %v116 = vadd.f32 %v114, %v115
    %v117 = vrot.slane %v116, 4
    %v118 = vadd.f32 %v116, %v117
    %v119 = vrot.slane %v118, 2
    %v120 = vadd.f32 %v118, %v119
    %v121 = vrot.slane %v120, 1
    %v122 = vadd.f32 %v120, %v121
    %v123 = vsel %vm102, %v122, inf
    %124 = vmin.xlane.f32.xlu0 %v123
    %v125 = vpop.xlane.xlu0 %124
    %p126 = scmp.eq.s32.totalorder 0, 0
    // Predicated region
    $region10: #{tpu_custom_call.1} parent=1 // pred_check
      %p127 = pneg %p126
    $region11: #{tpu_custom_call.1} parent=1 // pred_check_branch
      %129 = sbr.rel (%p127) target = $region13
    $region12: #{tpu_custom_call.1} parent=1 // pred_region
      %vm130 = vcmask 0
      %131 = vst.msk [vmem:[#allocation2] sm:$0x1] %vm130, %v125
    $region13: #{tpu_custom_call.1} parent=1 // pred_fallthru
      _
    %p132 = scmp.gt.s32.totalorder 0, 0
    // Predicated region
    $region14: #{tpu_custom_call.1} parent=1 // pred_check
      %p133 = pneg %p132
    $region15: #{tpu_custom_call.1} parent=1 // pred_check_branch
      %135 = sbr.rel (%p133) target = $region17
    $region16: #{tpu_custom_call.1} parent=1 // pred_region
      %v136 = vld [vmem:[#allocation2] sm:$0x1]
      %v137 = vmin.f32 %v136, %v125
      %vm138 = vcmask 0
      %139 = vst.msk [vmem:[#allocation2] sm:$0x1] %vm138, %v137
    $region17: #{tpu_custom_call.1} parent=1 // pred_fallthru
      _
    // Predicated region
    $region18: #{tpu_custom_call.1} parent=1 // pred_check
      _
    $region19: #{tpu_custom_call.1} parent=1 // pred_check_branch
      %141 = sbr.rel (0) target = $region21
    $region20: #{tpu_custom_call.1} parent=1 // pred_region
      _
    $region21: #{tpu_custom_call.1} parent=1 // pred_fallthru
      _
    // Predicated region
    $region22: #{tpu_custom_call.1} parent=1 // pred_check
      _
    $region23: #{tpu_custom_call.1} parent=1 // pred_check_branch
      %143 = sbr.rel (0) target = $region25
    $region24: #{tpu_custom_call.1} parent=1 // pred_region
      %s145 = ssub.s32 16, 16
      %146 = vsyncadd [#allocation3], %s145
      %s148 = sshll.u32 [#allocation2], 4
      %s149 = int_to_ptr.vmem [resolvable:$true] %s148
      %151 = dma.vmem_to_hbm [thread:$0]  %s149, 16, %s3, [#allocation3]
    $region25: #{tpu_custom_call.1} parent=1 // pred_fallthru
      _
    // Predicated region
    $region26: #{tpu_custom_call.1} parent=1 // pred_check
      _
    $region27: #{tpu_custom_call.1} parent=1 // pred_check_branch
      %153 = sbr.rel (0) target = $region29
    $region28: #{tpu_custom_call.1} parent=1 // pred_region
      _
    $region29: #{tpu_custom_call.1} parent=1 // pred_fallthru
      _
    // Predicated region
    $region30: #{tpu_custom_call.1} parent=1 // pred_check
      _
    $region31: #{tpu_custom_call.1} parent=1 // pred_check_branch
      %155 = sbr.rel (0) target = $region33
    $region32: #{tpu_custom_call.1} parent=1 // pred_region
      %156 = dma.done [#allocation3], 16
    $region33: #{tpu_custom_call.1} parent=1 // pred_fallthru
      _
    %157 = vsyncpa [#allocation3], 1

</llo_original>
